<compile_context>
chip_gen: v7x
topology: tpu7x:2x2x1
jax: 0.10.0
libtpu: 0.0.40
codegen_flags: <defaults>
</compile_context>

<pallas_src>
import math
import functools

import jax
import jax.numpy as jnp
from jax import lax
from jax.experimental import pallas as pl
from jax.experimental.pallas import tpu as pltpu


_HASH_MUL = 0x45D9F3B     # odd, < 2**31 (lowbias32/degski-style finaliser constant)
_SEED_MUL = 0x61C88647    # odd, < 2**31 (golden-ratio style seed mixer)


def _hash_i32(v):
    """Integer avalanche hash; all int32 ops (wrap-around multiply, logical shifts)."""
    v = lax.shift_right_logical(v, 16) ^ v
    v = v * jnp.int32(_HASH_MUL)
    v = lax.shift_right_logical(v, 16) ^ v
    v = v * jnp.int32(_HASH_MUL)
    v = lax.shift_right_logical(v, 16) ^ v
    return v


def _pe_dropout_kernel(seed_ref, x_ref, pe_ref, o_ref, *, p, training, batch):
    """Adds positional encoding and applies inverted dropout.

    seed_ref: (1,) int32, SMEM scalar prefetch.
    x_ref/o_ref: (S_TILE*batch, D) tile of the (S*B, D) view of x.
    pe_ref: (S_TILE, D) tile of the PE table, already in x's dtype.
    """
    rows, d = x_ref.shape
    s_tile = pe_ref.shape[0]

    x = x_ref[...]
    pe = pe_ref[...]
    # Row r of the x tile is (seq = r // batch, batch = r % batch): repeat each pe
    # row `batch` times along sublanes (same expand trick as GQA head-expansion).
    pe_rows = jnp.broadcast_to(pe[:, None, :], (s_tile, batch, d)).reshape(rows, d)
    y = x + pe_rows

    if training and p > 0.0:
        # Inverted dropout, Bernoulli(keep = 1 - p), integer threshold on 24 hash bits.
        # TODO(synk): RNG stream differs from torch.nn.Dropout (counter-based hash,
        # not Philox), but Bernoulli(1-p)/(1-p) inverted-dropout semantics match.
        base = pl.program_id(0) * rows                       # first global row of tile
        r_idx = lax.broadcasted_iota(jnp.int32, (rows, d), 0)
        c_idx = lax.broadcasted_iota(jnp.int32, (rows, d), 1)
        elem_id = (base + r_idx) * d + c_idx                 # tiling-invariant element id
        key = elem_id + seed_ref[0] * jnp.int32(_SEED_MUL)
        bits24 = _hash_i32(key) & jnp.int32(0x00FFFFFF)      # uniform in [0, 2^24)
        keep = bits24 >= jnp.int32(int(round(p * (1 << 24))))
        y = jnp.where(keep, y * (1.0 / (1.0 - p)), 0.0)

    o_ref[...] = y.astype(o_ref.dtype)


def make_positional_encoding(d_model, max_len=5000, dtype=jnp.float32):
    """(max_len, 1, d_model) sinusoidal table, exactly as the torch __init__.

    NOTE: the reference module uses -log(1000.0) (not the more common 10000.0);
    we match the module as specified.
    """
    assert d_model % 2 == 0, "d_model must be even (same constraint as the torch module)"
    position = jnp.arange(0, max_len, dtype=jnp.float32)[:, None]              # (L, 1)
    div_term = jnp.exp(
        jnp.arange(0, d_model, 2, dtype=jnp.float32) * (-math.log(1000.0) / d_model)
    )                                                                           # (D/2,)
    pe = jnp.zeros((max_len, d_model), dtype=jnp.float32)
    pe = pe.at[:, 0::2].set(jnp.sin(position * div_term))
    pe = pe.at[:, 1::2].set(jnp.cos(position * div_term))
    return pe[:, None, :].astype(dtype)                                         # (L, 1, D)


def _choose_s_tile(S, B, D, itemsize, target_bytes=2 * 1024 * 1024):
    """Sequence tile so each x/out tile is ~2 MiB (double-buffered -> ~8-10 MiB VMEM)."""
    rows_bytes = max(1, B * D * itemsize)
    s_tile = max(1, target_bytes // rows_bytes)
    if s_tile >= S:
        return S                                   # single block covers the sequence
    return min(max(8, (s_tile // 8) * 8), S)       # 8-aligned sublanes when tiling


def positional_encoding_forward(x, pe, *, dropout_p=0.1, training=True, seed=0):
    """x: (S, B, D); pe: (max_len, 1, D). Returns (S, B, D) = dropout(x + pe[:S])."""
    assert 0.0 <= float(dropout_p) < 1.0
    S, B, D = x.shape
    dtype = x.dtype
    itemsize = jnp.dtype(dtype).itemsize

    # Free, contiguous views: lane/sublane-dense 2D layout for x/out; pe pre-cast once.
    x2 = x.reshape(S * B, D)
    pe2 = pe[:S, 0, :].astype(dtype)                   # (S, D), like self.pe[:x.size(0)]

    s_tile = _choose_s_tile(S, B, D, itemsize)
    rows_per_block = s_tile * B
    grid = (pl.cdiv(S, s_tile),)

    seed_arr = jnp.array([seed], dtype=jnp.int32)
    kernel = functools.partial(
        _pe_dropout_kernel, p=float(dropout_p), training=bool(training), batch=B)

    cost = pl.CostEstimate(
        flops=2 * S * B * D,
        transcendentals=0,
        bytes_accessed=2 * S * B * D * itemsize + S * D * itemsize)

    out2 = pl.pallas_call(
        kernel,
        out_shape=jax.ShapeDtypeStruct((S * B, D), dtype),
        grid_spec=pltpu.PrefetchScalarGridSpec(
            num_scalar_prefetch=1,                    # seed lands in SMEM
            grid=grid,
            in_specs=[
                pl.BlockSpec((rows_per_block, D), lambda i, _seed: (i, 0)),   # x tile
                pl.BlockSpec((s_tile, D), lambda i, _seed: (i, 0)),           # pe tile
            ],
            out_specs=pl.BlockSpec((rows_per_block, D), lambda i, _seed: (i, 0)),
        ),
        compiler_params=pltpu.CompilerParams(
            dimension_semantics=("parallel",),        # no accumulator; v7x 2-TC sharding
            vmem_limit_bytes=32 * 1024 * 1024,        # headroom, safe on v7x's 64 MiB VMEM
        ),
        cost_estimate=cost,
    )(seed_arr, x2, pe2)

    return out2.reshape(S, B, D)


if __name__ == "__main__":
    # Small shapes consistent with the module: x is (seq, batch, d_model)
    S, B, D = 8, 2, 32
    max_len = 64
    p = 0.1

    key = jax.random.PRNGKey(0)
    x = jax.random.normal(key, (S, B, D), dtype=jnp.float32)
    pe = make_positional_encoding(D, max_len=max_len)

    # 1) Eval mode (dropout off): must equal x + pe[:S]
    out_eval = jax.block_until_ready(
        positional_encoding_forward(x, pe, dropout_p=p, training=False))
    ref = x + pe[:S]
    assert out_eval.shape == (S, B, D)
    assert jnp.allclose(out_eval, ref, atol=1e-6, rtol=1e-6), "PE add mismatch"

    # 2) Training mode: every element is either 0 (dropped) or (x+pe)/(1-p) (kept)
    out_train = jax.block_until_ready(
        positional_encoding_forward(x, pe, dropout_p=p, training=True, seed=123))
    assert out_train.shape == (S, B, D)
    scaled = ref / (1.0 - p)
    consistent = jnp.isclose(out_train, scaled, rtol=1e-5, atol=1e-6) | (out_train == 0.0)
    assert bool(jnp.all(consistent)), "dropout output inconsistent with x + pe"
    n_drop = int(jnp.sum(out_train == 0.0))
    assert 0 < n_drop < out_train.size, "dropout mask degenerate"

    print("KERNEL_OK")
</pallas_src>

<mosaic_0001>
module attributes {stable_mosaic.version = 11 : i64} {
  func.func @_pe_dropout_kernel(%arg0: i32, %arg1: memref<1xi32, #tpu.memory_space<smem>>, %arg2: memref<16x32xf32, #tpu.memory_space<vmem>>, %arg3: memref<8x32xf32, #tpu.memory_space<vmem>>, %arg4: memref<16x32xf32, #tpu.memory_space<vmem>>) attributes {dimension_semantics = [#tpu.dimension_semantics<parallel>], iteration_bounds = array<i64: 1>, scalar_prefetch = 1 : i64, scratch_operands = 0 : i64, tpu.core_type = #tpu.core_type<tc>, window_params = [{transform_indices = @transform_0, window_bounds = array<i64: 16, 32>}, {transform_indices = @transform_1, window_bounds = array<i64: 8, 32>}, {transform_indices = @transform_2, window_bounds = array<i64: 16, 32>}]} {
    %c0 = arith.constant 0 : index
    %c0_0 = arith.constant 0 : index
    %0 = vector.load %arg2[%c0, %c0_0] : memref<16x32xf32, #tpu.memory_space<vmem>>, vector<16x32xf32>
    %c0_1 = arith.constant 0 : index
    %c0_2 = arith.constant 0 : index
    %1 = vector.load %arg3[%c0_1, %c0_2] : memref<8x32xf32, #tpu.memory_space<vmem>>, vector<8x32xf32>
    %2 = vector.shape_cast %1 : vector<8x32xf32> to vector<8x1x32xf32>
    %3 = vector.shape_cast %2 : vector<8x1x32xf32> to vector<8x1x32xf32>
    %4 = vector.broadcast %3 : vector<8x1x32xf32> to vector<8x2x32xf32>
    %5 = vector.shape_cast %4 : vector<8x2x32xf32> to vector<16x32xf32>
    %6 = arith.addf %0, %5 : vector<16x32xf32>
    %c0_3 = arith.constant 0 : index
    %c0_4 = arith.constant 0 : index
    %7 = vector.load %arg4[%c0_3, %c0_4] : memref<16x32xf32, #tpu.memory_space<vmem>>, vector<16x32xf32>
    tpu.vector_store %arg4[%c0_3, %c0_4], %6 {strides = array<i32>} : memref<16x32xf32, #tpu.memory_space<vmem>>, vector<16x32xf32>,
    return
  }
  func.func @transform_0(%arg0: i32, %arg1: memref<1xi32, #tpu.memory_space<smem>>) -> (i32, i32) {
    %c0_i32 = arith.constant 0 : i32
    %c0_i32_0 = arith.constant 0 : i32
    return %arg0, %c0_i32 : i32, i32
  }
  func.func @transform_1(%arg0: i32, %arg1: memref<1xi32, #tpu.memory_space<smem>>) -> (i32, i32) {
    %c0_i32 = arith.constant 0 : i32
    %c0_i32_0 = arith.constant 0 : i32
    return %arg0, %c0_i32 : i32, i32
  }
  func.func @transform_2(%arg0: i32, %arg1: memref<1xi32, #tpu.memory_space<smem>>) -> (i32, i32) {
    %c0_i32 = arith.constant 0 : i32
    %c0_i32_0 = arith.constant 0 : i32
    return %arg0, %c0_i32 : i32, i32
  }
}

</mosaic_0001>

<llo_original>
// kernel: tpu_custom_call.1
$region0: #{tpu_custom_call.1}
  #allocation0 [shape = 'u32[]', space=smem, size = 0x4, offset = 0x4, fixed_abs, tag = 'smem constant byte address 0x4 - core index']
  #allocation1 [shape = 'u32[144,128]{1,0:T(1,128)}', space=vmem, size = 0x12000, scoped, tag = 'internal scratch']
  #allocation2 [shape = 's32[1]{0}', space=sflag, size = 0x4, scoped, tag = 'scoped memory for tpu_custom_call.1']
  #allocation3 [shape = 's32[1]{0:T(128)S(6)}', space=smem, size = 0x200, scoped, tag = 'prefetched SMEM operand 0']
  %s0 = inlined_call_operand.<no memory space> [shape: s32[1], index: 0, kind: input, shape index: {}]
  %s1 = inlined_call_operand.hbm [shape: f32[16,32], index: 1, kind: input, shape index: {}]
  %s2 = inlined_call_operand.hbm [shape: f32[8,32], index: 2, kind: input, shape index: {}]
  %s3 = inlined_call_operand.hbm [shape: f32[16,32], index: 3, kind: output, shape index: {}]
  %s4 = sld [smem:[#allocation0]]
  $region26: #{tpu_custom_call.1} parent=0
    _
  %s6 = ssub.s32 1, %s4
  %s7 = scalar_select 0, %s6, %s4
  %8 = sst [smem:[#allocation3]] %s0
  $region1: #{tpu_custom_call.1} parent=0
    #allocation4 [shape = 'u8[8192]{0}', space=vmem, size = 0x2000, scoped, tag = 'input window, operand 1, single buffered']
    #allocation5 [shape = 's32[1]{0}', space=sflag, size = 0x4, scoped, tag = 'scoped memory for tpu_custom_call.1']
    #allocation6 [shape = 's32[1]{0}', space=sflag, size = 0x4, scoped, tag = 'scoped memory for tpu_custom_call.1']
    #allocation7 [shape = 'u8[4096]{0}', space=vmem, size = 0x1000, scoped, tag = 'input window, operand 2, single buffered']
    #allocation8 [shape = 's32[1]{0}', space=sflag, size = 0x4, scoped, tag = 'scoped memory for tpu_custom_call.1']
    #allocation9 [shape = 'u8[8192]{0}', space=vmem, size = 0x2000, scoped, tag = 'output window, operand 0, single buffered']
    %9 = vsyncpa [#allocation5], 0
    %10 = vsyncpa [#allocation8], 0
    %11 = vsyncpa [#allocation6], 0
    // Predicated region
    $region2: #{tpu_custom_call.1} parent=1 // pred_check
      _
    $region3: #{tpu_custom_call.1} parent=1 // pred_check_branch
      %13 = sbr.rel (0) target = $region5
    $region4: #{tpu_custom_call.1} parent=1 // pred_region
      %s15 = ssub.s32 256, 256
      %16 = vsyncadd [#allocation5], %s15
      %s17 = sshll.u32 [#allocation4], 4
      %s18 = int_to_ptr.vmem [resolvable:$true] %s17
      %23 = dma.hbm_to_vmem [thread:$0]  %s1, 256, %s18, [#allocation5], 128, 128, 8
    $region5: #{tpu_custom_call.1} parent=1 // pred_fallthru
      _
    // Predicated region
    $region6: #{tpu_custom_call.1} parent=1 // pred_check
      _
    $region7: #{tpu_custom_call.1} parent=1 // pred_check_branch
      %25 = sbr.rel (0) target = $region9
    $region8: #{tpu_custom_call.1} parent=1 // pred_region
      %s27 = ssub.s32 128, 128
      %28 = vsyncadd [#allocation8], %s27
      %s30 = sshll.u32 [#allocation7], 4
      %s31 = int_to_ptr.vmem [resolvable:$true] %s30
      %33 = dma.hbm_to_vmem [thread:$0]  %s2, 128, %s31, [#allocation8]
    $region9: #{tpu_custom_call.1} parent=1 // pred_fallthru
      _
    // Predicated region
    $region10: #{tpu_custom_call.1} parent=1 // pred_check
      _
    $region11: #{tpu_custom_call.1} parent=1 // pred_check_branch
      %35 = sbr.rel (0) target = $region13
    $region12: #{tpu_custom_call.1} parent=1 // pred_region
      %36 = dma.done [#allocation5], 256
    $region13: #{tpu_custom_call.1} parent=1 // pred_fallthru
      _
    // Predicated region
    $region14: #{tpu_custom_call.1} parent=1 // pred_check
      _
    $region15: #{tpu_custom_call.1} parent=1 // pred_check_branch
      %38 = sbr.rel (0) target = $region17
    $region16: #{tpu_custom_call.1} parent=1 // pred_region
      %39 = dma.done [#allocation8], 128
    $region17: #{tpu_custom_call.1} parent=1 // pred_fallthru
      _
    %v40 = vld [vmem:[#allocation4] sm:$0xff]
    %v41 = vld [vmem:[#allocation4 + $0x8] sm:$0xff]
    %v42 = vld [vmem:[#allocation7] sm:$0xff]
    %v44 = vcombine.high %v42, %v42
    %v46 = vunpack.c.l.s4 1966171168
    %v47 = vunpack.c.0.s8 %v46
    %v48 = vlaneseq
    %v49 = vshrl.u32 %v48, 7
    %v50 = vsub.s32 %v47, %v49
    %v51 = vrot.slane %v42, %v50
    %v53 = vunpack.c.l.s4 1966171168
    %v54 = vunpack.c.0.s8 %v53
    %v55 = vlaneseq
    %v56 = vshrl.u32 %v55, 7
    %v57 = vsub.s32 %v54, %v56
    %v58 = vrot.slane %v44, %v57
    %v59 = vcombine.high %v51, %v51
    %v60 = vcombine.high %v58, %v58
    %v62 = vunpack.c.l.s4 1966171168
    %v63 = vunpack.c.0.s8 %v62
    %v64 = vlaneseq
    %v65 = vshrl.u32 %v64, 7
    %v66 = vsub.s32 %v63, %v65
    %v67 = vrot.slane %v51, %v66
    %v69 = vunpack.c.l.s4 1966171168
    %v70 = vunpack.c.0.s8 %v69
    %v71 = vlaneseq
    %v72 = vshrl.u32 %v71, 7
    %v73 = vsub.s32 %v70, %v72
    %v74 = vrot.slane %v58, %v73
    %v76 = vunpack.c.l.s4 1966171168
    %v77 = vunpack.c.0.s8 %v76
    %v78 = vlaneseq
    %v79 = vshrl.u32 %v78, 7
    %v80 = vsub.s32 %v77, %v79
    %v81 = vrot.slane %v59, %v80
    %v83 = vunpack.c.l.s4 1966171168
    %v84 = vunpack.c.0.s8 %v83
    %v85 = vlaneseq
    %v86 = vshrl.u32 %v85, 7
    %v87 = vsub.s32 %v84, %v86
    %v88 = vrot.slane %v60, %v87
    %v89 = vcombine.high %v67, %v67
    %v90 = vcombine.high %v74, %v74
    %v91 = vcombine.high %v81, %v81
    %v92 = vcombine.high %v88, %v88
    %v93 = vlaneseq
    %v94 = vshrl.u32 %v93, 7
    %v95 = vsub.s32 0, %v94
    %v96 = vrot.slane %v67, %v95
    %v97 = vlaneseq
    %v98 = vshrl.u32 %v97, 7
    %v99 = vsub.s32 0, %v98
    %v100 = vrot.slane %v81, %v99
    %v101 = vlaneseq
    %v102 = vshrl.u32 %v101, 7
    %v103 = vsub.s32 0, %v102
    %v104 = vrot.slane %v89, %v103
    %v105 = vlaneseq
    %v106 = vshrl.u32 %v105, 7
    %v107 = vsub.s32 0, %v106
    %v108 = vrot.slane %v91, %v107
    %v109 = vlaneseq
    %v110 = vshrl.u32 %v109, 7
    %v111 = vsub.s32 0, %v110
    %v112 = vrot.slane %v74, %v111
    %v113 = vlaneseq
    %v114 = vshrl.u32 %v113, 7
    %v115 = vsub.s32 0, %v114
    %v116 = vrot.slane %v88, %v115
    %v117 = vlaneseq
    %v118 = vshrl.u32 %v117, 7
    %v119 = vsub.s32 0, %v118
    %v120 = vrot.slane %v90, %v119
    %v121 = vlaneseq
    %v122 = vshrl.u32 %v121, 7
    %v123 = vsub.s32 0, %v122
    %v124 = vrot.slane %v92, %v123
    %v125 = vcombine.low %v96, %v100
    %v126 = vcombine.low %v104, %v108
    %v128 = vunpack.c.l.s4 1983009808
    %v129 = vunpack.c.0.s8 %v128
    %v130 = vlaneseq
    %v131 = vshrl.u32 %v130, 7
    %v132 = vsub.s32 %v129, %v131
    %v133 = vrot.slane %v125, %v132
    %v135 = vunpack.c.l.s4 1983009808
    %v136 = vunpack.c.0.s8 %v135
    %v137 = vlaneseq
    %v138 = vshrl.u32 %v137, 7
    %v139 = vsub.s32 %v136, %v138
    %v140 = vrot.slane %v126, %v139
    %v141 = vcombine.low %v133, %v140
    %v142 = vcombine.low %v112, %v116
    %v143 = vcombine.low %v120, %v124
    %v145 = vunpack.c.l.s4 1983009808
    %v146 = vunpack.c.0.s8 %v145
    %v147 = vlaneseq
    %v148 = vshrl.u32 %v147, 7
    %v149 = vsub.s32 %v146, %v148
    %v150 = vrot.slane %v142, %v149
    %v152 = vunpack.c.l.s4 1983009808
    %v153 = vunpack.c.0.s8 %v152
    %v154 = vlaneseq
    %v155 = vshrl.u32 %v154, 7
    %v156 = vsub.s32 %v153, %v155
    %v157 = vrot.slane %v143, %v156
    %v158 = vcombine.low %v150, %v157
    %v161 = vadd.f32 %v40, %v141
    %v162 = vadd.f32 %v41, %v158
    %vm163 = vcmask 261120
    %164 = vst.msk [vmem:[#allocation9] sm:$0xff] %vm163, %v161
    %165 = vst.msk [vmem:[#allocation9 + $0x8] sm:$0xff] %vm163, %v162
    // Predicated region
    $region18: #{tpu_custom_call.1} parent=1 // pred_check
      _
    $region19: #{tpu_custom_call.1} parent=1 // pred_check_branch
      %167 = sbr.rel (0) target = $region21
    $region20: #{tpu_custom_call.1} parent=1 // pred_region
      %s169 = ssub.s32 256, 256
      %170 = vsyncadd [#allocation6], %s169
      %s171 = sshll.u32 [#allocation9], 4
      %s172 = int_to_ptr.vmem [resolvable:$true] %s171
      %177 = dma.vmem_to_hbm [thread:$0]  %s172, 256, %s3, [#allocation6], 128, 128, 8
    $region21: #{tpu_custom_call.1} parent=1 // pred_fallthru
      _
    // Predicated region
    $region22: #{tpu_custom_call.1} parent=1 // pred_check
      _
    $region23: #{tpu_custom_call.1} parent=1 // pred_check_branch
      %179 = sbr.rel (0) target = $region25
    $region24: #{tpu_custom_call.1} parent=1 // pred_region
      %180 = dma.done [#allocation6], 256
    $region25: #{tpu_custom_call.1} parent=1 // pred_fallthru
      _
    %181 = vsyncpa [#allocation5], 1
    %182 = vsyncpa [#allocation8], 1
    %183 = vsyncpa [#allocation6], 1

</llo_original>
